<compile_context>
chip_gen: v7x
topology: tpu7x:2x2x1
jax: 0.10.0
libtpu: 0.0.40
codegen_flags: <defaults>
</compile_context>

<pallas_src>
import jax
import jax.numpy as jnp
import numpy as np
from jax.experimental import pallas as pl
from jax.experimental.pallas import tpu as pltpu


# ---------------------------------------------------------------------------
# Kernel bodies
# ---------------------------------------------------------------------------
def _output_layer_math(x_bf16, w1, b1, gamma, beta, w2, b2, eps=1e-12):
    """OutputLayer: Linear(D->2D) -> ReLU -> BertLayerNorm(2D) -> Dropout(eval=id) -> Linear(2D->A).

    x/w1/w2 are bf16 (MXU inputs, f32 accumulation); ReLU/LayerNorm math is f32.
    LayerNorm is single-pass: var = E[h^2] - E[h]^2, normalized with rsqrt (EUP).
    """
    h = jnp.dot(x_bf16, w1, preferred_element_type=jnp.float32) + b1     # (tm, 2D) f32
    h = jnp.maximum(h, 0.0)
    mean = jnp.mean(h, axis=-1, keepdims=True)
    mean_sq = jnp.mean(h * h, axis=-1, keepdims=True)
    var = jnp.maximum(mean_sq - mean * mean, 0.0)
    inv = jax.lax.rsqrt(var + eps)            # TF-style LayerNorm: eps inside sqrt, biased var
    h = (h - mean) * inv * gamma + beta
    # TODO(synk): nn.Dropout(config.trans_drop) is identity at inference; train-mode dropout not implemented.
    return jnp.dot(h.astype(w2.dtype), w2, preferred_element_type=jnp.float32) + b2


def _fused_span_kernel(x_ref, mask_ref,
                       sw1_ref, sb1_ref, sg_ref, sbe_ref, sw2_ref, sb2_ref,
                       ew1_ref, eb1_ref, eg_ref, ebe_ref, ew2_ref, eb2_ref,
                       start_ref, end_ref):
    """Fused start + end OutputLayer heads (num_answer=1) + `- 1e30 * (1 - context_mask)`.

    The activation tile x_ref is read once and fed to both heads.
    """
    x = x_ref[...]                                       # (tm, D) bf16
    neg = 1e30 * (1.0 - mask_ref[...])                   # (tm, 1) f32
    start_ref[...] = _output_layer_math(
        x, sw1_ref[...], sb1_ref[...], sg_ref[...], sbe_ref[...],
        sw2_ref[...], sb2_ref[...]) - neg
    end_ref[...] = _output_layer_math(
        x, ew1_ref[...], eb1_ref[...], eg_ref[...], ebe_ref[...],
        ew2_ref[...], eb2_ref[...]) - neg


def _type_kernel(x_ref, w1_ref, b1_ref, g_ref, be_ref, w2_ref, b2_ref, out_ref):
    """Type OutputLayer (num_answer=4) on the per-batch first token (tiny: B rows)."""
    out_ref[...] = _output_layer_math(
        x_ref[...], w1_ref[...], b1_ref[...], g_ref[...], be_ref[...],
        w2_ref[...], b2_ref[...])


# ---------------------------------------------------------------------------
# pallas_call wrappers
# ---------------------------------------------------------------------------
def _round_up(x, m):
    return ((x + m - 1) // m) * m


def _head_specs(d, two_d, a):
    """BlockSpecs for one OutputLayer parameter set (grid-invariant, whole-array blocks)."""
    return [
        pl.BlockSpec((d, two_d), lambda i: (0, 0)),      # w1 (bf16)
        pl.BlockSpec((1, two_d), lambda i: (0, 0)),      # b1 (f32)
        pl.BlockSpec((1, two_d), lambda i: (0, 0)),      # gamma (f32)
        pl.BlockSpec((1, two_d), lambda i: (0, 0)),      # beta (f32)
        pl.BlockSpec((two_d, a), lambda i: (0, 0)),      # w2 (bf16)
        pl.BlockSpec((1, a), lambda i: (0, 0)),          # b2 (f32)
    ]


def _head_args(params):
    """Cast matmul operands to bf16 (f32 accumulation in-kernel); keep LN params f32."""
    return (params["w1"].astype(jnp.bfloat16), params["b1"], params["gamma"],
            params["beta"], params["w2"].astype(jnp.bfloat16), params["b2"])


def fused_span_heads(x2d, mask2d, start_params, end_params, *, max_tile=256):
    """x2d: [N, D] f32, mask2d: [N, 1] f32 -> (start, end) masked logits, each [N, 1] f32.

    One pallas_call computes both heads from the same activation tile. The token axis is
    tiled at up to `max_tile` rows (MXU-saturating) and padded to a tile multiple.
    """
    n, d = x2d.shape
    two_d = start_params["w1"].shape[1]

    tm = max_tile if n >= max_tile else _round_up(n, 8)
    n_pad = _round_up(n, tm)
    x_bf = x2d.astype(jnp.bfloat16)
    if n_pad != n:
        x_bf = jnp.pad(x_bf, ((0, n_pad - n), (0, 0)))
        mask2d = jnp.pad(mask2d, ((0, n_pad - n), (0, 0)))   # pad mask=0 -> -1e30, sliced off below

    grid = (n_pad // tm,)
    start_full, end_full = pl.pallas_call(
        _fused_span_kernel,
        out_shape=(jax.ShapeDtypeStruct((n_pad, 1), jnp.float32),
                   jax.ShapeDtypeStruct((n_pad, 1), jnp.float32)),
        grid=grid,
        in_specs=[
            pl.BlockSpec((tm, d), lambda i: (i, 0)),          # x tile
            pl.BlockSpec((tm, 1), lambda i: (i, 0)),          # mask tile
        ] + _head_specs(d, two_d, 1) + _head_specs(d, two_d, 1),
        out_specs=(pl.BlockSpec((tm, 1), lambda i: (i, 0)),
                   pl.BlockSpec((tm, 1), lambda i: (i, 0))),
        compiler_params=pltpu.CompilerParams(
            dimension_semantics=("parallel",),                # v7x: shard token tiles across TCs
            vmem_limit_bytes=64 * 1024 * 1024),
    )(x_bf, mask2d, *_head_args(start_params), *_head_args(end_params))

    return start_full[:n], end_full[:n]


def type_output_layer(x2d, params):
    """x2d: [B, D] f32 (first token of each batch) -> [B, 4] logits. Tiny, single grid step."""
    n, d = x2d.shape
    two_d = params["w1"].shape[1]
    a = params["w2"].shape[1]
    return pl.pallas_call(
        _type_kernel,
        out_shape=jax.ShapeDtypeStruct((n, a), jnp.float32),
        grid=(1,),
        in_specs=[pl.BlockSpec((n, d), lambda i: (0, 0))] + _head_specs(d, two_d, a),
        out_specs=pl.BlockSpec((n, a), lambda i: (0, 0)),
        compiler_params=pltpu.CompilerParams(
            dimension_semantics=("arbitrary",),
            vmem_limit_bytes=64 * 1024 * 1024),
    )(x2d.astype(jnp.bfloat16), *_head_args(params))


# ---------------------------------------------------------------------------
# PredictionLayer forward
# ---------------------------------------------------------------------------
def prediction_layer_forward(params, batch, context_input, sent_logits,
                             packing_mask=None, return_yp=False):
    context_mask = batch["context_mask"]      # [B, L]
    _context_lens = batch["context_lens"]     # read (unused by the reference forward)
    _sent_mapping = batch["sent_mapping"]     # [B, L, S_sent]
    del sent_logits                           # sp_forward = bmm(sent_mapping, sent_logits) is
                                              # computed but never used in the reference forward,
                                              # so the dead bmm is dropped (no HBM pass wasted).

    B, L, D = context_input.shape
    x2d = context_input.reshape(B * L, D)
    mask2d = context_mask.reshape(B * L, 1).astype(jnp.float32)

    start_col, end_col = fused_span_heads(x2d, mask2d, params["start"], params["end"])
    start_prediction = start_col.reshape(B, L)
    end_prediction = end_col.reshape(B, L)
    type_prediction = type_output_layer(context_input[:, 0, :], params["type"])   # [B, 4]

    if not return_yp:
        return start_prediction, end_prediction, type_prediction

    # return_yp path (span selection) -- small glue kept in plain JAX.
    outer = start_prediction[:, :, None] + end_prediction[:, None, :]       # [B, L, L]
    np_mask = np.tril(np.triu(np.ones((L, L)), 0), 15)                      # band mask, width 16
    outer_mask = jnp.asarray(np_mask, dtype=outer.dtype)
    outer = outer - 1e30 * (1.0 - outer_mask[None, :, :])
    if packing_mask is not None:
        outer = outer - 1e30 * packing_mask[:, :, None]
    yp1 = jnp.argmax(jnp.max(outer, axis=2), axis=1)
    yp2 = jnp.argmax(jnp.max(outer, axis=1), axis=1)
    return start_prediction, end_prediction, type_prediction, yp1, yp2


# ---------------------------------------------------------------------------
# Deterministic parameter construction (shapes from OutputLayer.__init__)
# ---------------------------------------------------------------------------
def make_output_layer_params(key, d, num_answer):
    two_d = 2 * d
    k1, k2, k3, k4, k5, k6 = jax.random.split(key, 6)
    return {
        "w1": 0.05 * jax.random.normal(k1, (d, two_d), jnp.float32),
        "b1": 0.05 * jax.random.normal(k2, (1, two_d), jnp.float32),
        "gamma": 1.0 + 0.1 * jax.random.normal(k3, (1, two_d), jnp.float32),
        "beta": 0.1 * jax.random.normal(k4, (1, two_d), jnp.float32),
        "w2": 0.05 * jax.random.normal(k5, (two_d, num_answer), jnp.float32),
        "b2": 0.05 * jax.random.normal(k6, (1, num_answer), jnp.float32),
    }


if __name__ == "__main__":
    key = jax.random.PRNGKey(0)
    B, L, D, S_SENT = 2, 8, 32, 4   # batch, seq, input_dim(=hidden_dim), num sentences

    kp, kx, ks = jax.random.split(key, 3)
    kps, kpe, kpt = jax.random.split(kp, 3)
    params = {
        "start": make_output_layer_params(kps, D, 1),
        "end": make_output_layer_params(kpe, D, 1),
        "type": make_output_layer_params(kpt, D, 4),
    }

    context_input = jax.random.normal(kx, (B, L, D), jnp.float32)
    sent_logits = jax.random.normal(ks, (B, S_SENT, 1), jnp.float32)

    # token -> sentence one-hot mapping (kept for interface parity; bmm is dead in the reference)
    sent_ids = np.minimum(np.arange(L) // (L // S_SENT), S_SENT - 1)
    sent_mapping = jnp.asarray(
        np.broadcast_to(np.eye(S_SENT, dtype=np.float32)[sent_ids], (B, L, S_SENT)))

    # valid-token mask: batch 0 has 8 valid tokens, batch 1 has 6
    context_lens = jnp.array([L, L - 2], dtype=jnp.int32)
    context_mask = (jnp.arange(L)[None, :] < context_lens[:, None]).astype(jnp.float32)

    batch = {
        "context_mask": context_mask,
        "context_lens": context_lens,
        "sent_mapping": sent_mapping,
    }

    start_p, end_p, type_p = prediction_layer_forward(
        params, batch, context_input, sent_logits, return_yp=False)
    outs_yp = prediction_layer_forward(
        params, batch, context_input, sent_logits, return_yp=True)

    jax.block_until_ready((start_p, end_p, type_p))
    jax.block_until_ready(outs_yp)

    assert start_p.shape == (B, L) and end_p.shape == (B, L) and type_p.shape == (B, 4)
    assert outs_yp[3].shape == (B,) and outs_yp[4].shape == (B,)
    assert bool(jnp.all(jnp.isfinite(type_p)))
    print("KERNEL_OK")
</pallas_src>

<mosaic_0001>
module attributes {stable_mosaic.version = 11 : i64} {
  func.func @_fused_span_kernel(%arg0: i32, %arg1: memref<16x32xbf16, #tpu.memory_space<vmem>>, %arg2: memref<16x1xf32, #tpu.memory_space<vmem>>, %arg3: memref<32x64xbf16, #tpu.memory_space<vmem>>, %arg4: memref<1x64xf32, #tpu.memory_space<vmem>>, %arg5: memref<1x64xf32, #tpu.memory_space<vmem>>, %arg6: memref<1x64xf32, #tpu.memory_space<vmem>>, %arg7: memref<64x1xbf16, #tpu.memory_space<vmem>>, %arg8: memref<1x1xf32, #tpu.memory_space<vmem>>, %arg9: memref<32x64xbf16, #tpu.memory_space<vmem>>, %arg10: memref<1x64xf32, #tpu.memory_space<vmem>>, %arg11: memref<1x64xf32, #tpu.memory_space<vmem>>, %arg12: memref<1x64xf32, #tpu.memory_space<vmem>>, %arg13: memref<64x1xbf16, #tpu.memory_space<vmem>>, %arg14: memref<1x1xf32, #tpu.memory_space<vmem>>, %arg15: memref<16x1xf32, #tpu.memory_space<vmem>>, %arg16: memref<16x1xf32, #tpu.memory_space<vmem>>) attributes {dimension_semantics = [#tpu.dimension_semantics<parallel>], iteration_bounds = array<i64: 1>, scalar_prefetch = 0 : i64, scratch_operands = 0 : i64, tpu.core_type = #tpu.core_type<tc>, window_params = [{transform_indices = @transform_0, window_bounds = array<i64: 16, 32>}, {transform_indices = @transform_1, window_bounds = array<i64: 16, 1>}, {pipeline_mode = #tpu.pipeline_mode<synchronous>, transform_indices = @transform_2, window_bounds = array<i64: 32, 64>}, {pipeline_mode = #tpu.pipeline_mode<synchronous>, transform_indices = @transform_3, window_bounds = array<i64: 1, 64>}, {pipeline_mode = #tpu.pipeline_mode<synchronous>, transform_indices = @transform_4, window_bounds = array<i64: 1, 64>}, {pipeline_mode = #tpu.pipeline_mode<synchronous>, transform_indices = @transform_5, window_bounds = array<i64: 1, 64>}, {pipeline_mode = #tpu.pipeline_mode<synchronous>, transform_indices = @transform_6, window_bounds = array<i64: 64, 1>}, {pipeline_mode = #tpu.pipeline_mode<synchronous>, transform_indices = @transform_7, window_bounds = array<i64: 1, 1>}, {pipeline_mode = #tpu.pipeline_mode<synchronous>, transform_indices = @transform_8, window_bounds = array<i64: 32, 64>}, {pipeline_mode = #tpu.pipeline_mode<synchronous>, transform_indices = @transform_9, window_bounds = array<i64: 1, 64>}, {pipeline_mode = #tpu.pipeline_mode<synchronous>, transform_indices = @transform_10, window_bounds = array<i64: 1, 64>}, {pipeline_mode = #tpu.pipeline_mode<synchronous>, transform_indices = @transform_11, window_bounds = array<i64: 1, 64>}, {pipeline_mode = #tpu.pipeline_mode<synchronous>, transform_indices = @transform_12, window_bounds = array<i64: 64, 1>}, {pipeline_mode = #tpu.pipeline_mode<synchronous>, transform_indices = @transform_13, window_bounds = array<i64: 1, 1>}, {transform_indices = @transform_14, window_bounds = array<i64: 16, 1>}, {transform_indices = @transform_15, window_bounds = array<i64: 16, 1>}]} {
    %c0 = arith.constant 0 : index
    %c0_0 = arith.constant 0 : index
    %0 = vector.load %arg1[%c0, %c0_0] : memref<16x32xbf16, #tpu.memory_space<vmem>>, vector<16x32xbf16>
    %c0_1 = arith.constant 0 : index
    %c0_2 = arith.constant 0 : index
    %1 = vector.load %arg2[%c0_1, %c0_2] : memref<16x1xf32, #tpu.memory_space<vmem>>, vector<16x1xf32>
    %cst = arith.constant 1.000000e+00 : f32
    %2 = vector.broadcast %cst : f32 to vector<16x1xf32>
    %3 = arith.subf %2, %1 : vector<16x1xf32>
    %cst_3 = arith.constant 1.000000e+30 : f32
    %4 = vector.broadcast %cst_3 : f32 to vector<16x1xf32>
    %5 = arith.mulf %4, %3 : vector<16x1xf32>
    %c0_4 = arith.constant 0 : index
    %c0_5 = arith.constant 0 : index
    %6 = vector.load %arg3[%c0_4, %c0_5] : memref<32x64xbf16, #tpu.memory_space<vmem>>, vector<32x64xbf16>
    %c0_6 = arith.constant 0 : index
    %c0_7 = arith.constant 0 : index
    %7 = vector.load %arg4[%c0_6, %c0_7] : memref<1x64xf32, #tpu.memory_space<vmem>>, vector<1x64xf32>
    %c0_8 = arith.constant 0 : index
    %c0_9 = arith.constant 0 : index
    %8 = vector.load %arg5[%c0_8, %c0_9] : memref<1x64xf32, #tpu.memory_space<vmem>>, vector<1x64xf32>
    %c0_10 = arith.constant 0 : index
    %c0_11 = arith.constant 0 : index
    %9 = vector.load %arg6[%c0_10, %c0_11] : memref<1x64xf32, #tpu.memory_space<vmem>>, vector<1x64xf32>
    %c0_12 = arith.constant 0 : index
    %c0_13 = arith.constant 0 : index
    %10 = vector.load %arg7[%c0_12, %c0_13] : memref<64x1xbf16, #tpu.memory_space<vmem>>, vector<64x1xbf16>
    %c0_14 = arith.constant 0 : index
    %c0_15 = arith.constant 0 : index
    %11 = vector.load %arg8[%c0_14, %c0_15] : memref<1x1xf32, #tpu.memory_space<vmem>>, vector<1x1xf32>
    %cst_16 = arith.constant dense<0.000000e+00> : vector<16x64xf32>
    %12 = tpu.matmul %0, %6, %cst_16 {dimension_numbers = #tpu.dot_dimension_numbers<[1], [0], [0], [1], [0, 0, 1, 1], [], []>} : vector<16x32xbf16>, vector<32x64xbf16>, vector<16x64xf32> -> vector<16x64xf32>
    %13 = vector.broadcast %7 : vector<1x64xf32> to vector<16x64xf32>
    %14 = arith.addf %12, %13 : vector<16x64xf32>
    %cst_17 = arith.constant 0.000000e+00 : f32
    %15 = vector.broadcast %cst_17 : f32 to vector<16x64xf32>
    %16 = arith.maximumf %14, %15 : vector<16x64xf32>
    %cst_18 = arith.constant dense<0.000000e+00> : vector<16xf32>
    %17 = vector.multi_reduction <add>, %16, %cst_18 [1] : vector<16x64xf32> to vector<16xf32>
    %18 = vector.shape_cast %17 : vector<16xf32> to vector<16x1xf32>
    %cst_19 = arith.constant 6.400000e+01 : f32
    %19 = vector.broadcast %cst_19 : f32 to vector<16x1xf32>
    %20 = arith.divf %18, %19 : vector<16x1xf32>
    %21 = arith.mulf %16, %16 : vector<16x64xf32>
    %cst_20 = arith.constant dense<0.000000e+00> : vector<16xf32>
    %22 = vector.multi_reduction <add>, %21, %cst_20 [1] : vector<16x64xf32> to vector<16xf32>
    %23 = vector.shape_cast %22 : vector<16xf32> to vector<16x1xf32>
    %cst_21 = arith.constant 6.400000e+01 : f32
    %24 = vector.broadcast %cst_21 : f32 to vector<16x1xf32>
    %25 = arith.divf %23, %24 : vector<16x1xf32>
    %26 = arith.mulf %20, %20 : vector<16x1xf32>
    %27 = arith.subf %25, %26 : vector<16x1xf32>
    %cst_22 = arith.constant 0.000000e+00 : f32
    %28 = vector.broadcast %cst_22 : f32 to vector<16x1xf32>
    %29 = arith.maximumf %27, %28 : vector<16x1xf32>
    %cst_23 = arith.constant 9.99999996E-13 : f32
    %30 = vector.broadcast %cst_23 : f32 to vector<16x1xf32>
    %31 = arith.addf %29, %30 : vector<16x1xf32>
    %32 = math.rsqrt %31 : vector<16x1xf32>
    %33 = vector.broadcast %20 : vector<16x1xf32> to vector<16x64xf32>
    %34 = arith.subf %16, %33 : vector<16x64xf32>
    %35 = vector.broadcast %32 : vector<16x1xf32> to vector<16x64xf32>
    %36 = arith.mulf %34, %35 : vector<16x64xf32>
    %37 = vector.broadcast %8 : vector<1x64xf32> to vector<16x64xf32>
    %38 = arith.mulf %36, %37 : vector<16x64xf32>
    %39 = vector.broadcast %9 : vector<1x64xf32> to vector<16x64xf32>
    %40 = arith.addf %38, %39 : vector<16x64xf32>
    %41 = arith.truncf %40 : vector<16x64xf32> to vector<16x64xbf16>
    %cst_24 = arith.constant dense<0.000000e+00> : vector<16x1xf32>
    %42 = tpu.matmul %41, %10, %cst_24 {dimension_numbers = #tpu.dot_dimension_numbers<[1], [0], [0], [1], [0, 0, 1, 1], [], []>} : vector<16x64xbf16>, vector<64x1xbf16>, vector<16x1xf32> -> vector<16x1xf32>
    %43 = vector.broadcast %11 : vector<1x1xf32> to vector<16x1xf32>
    %44 = arith.addf %42, %43 : vector<16x1xf32>
    %45 = arith.subf %44, %5 : vector<16x1xf32>
    %c0_25 = arith.constant 0 : index
    %c0_26 = arith.constant 0 : index
    %46 = vector.load %arg15[%c0_25, %c0_26] : memref<16x1xf32, #tpu.memory_space<vmem>>, vector<16x1xf32>
    tpu.vector_store %arg15[%c0_25, %c0_26], %45 {strides = array<i32>} : memref<16x1xf32, #tpu.memory_space<vmem>>, vector<16x1xf32>,
    %c0_27 = arith.constant 0 : index
    %c0_28 = arith.constant 0 : index
    %47 = vector.load %arg9[%c0_27, %c0_28] : memref<32x64xbf16, #tpu.memory_space<vmem>>, vector<32x64xbf16>
    %c0_29 = arith.constant 0 : index
    %c0_30 = arith.constant 0 : index
    %48 = vector.load %arg10[%c0_29, %c0_30] : memref<1x64xf32, #tpu.memory_space<vmem>>, vector<1x64xf32>
    %c0_31 = arith.constant 0 : index
    %c0_32 = arith.constant 0 : index
    %49 = vector.load %arg11[%c0_31, %c0_32] : memref<1x64xf32, #tpu.memory_space<vmem>>, vector<1x64xf32>
    %c0_33 = arith.constant 0 : index
    %c0_34 = arith.constant 0 : index
    %50 = vector.load %arg12[%c0_33, %c0_34] : memref<1x64xf32, #tpu.memory_space<vmem>>, vector<1x64xf32>
    %c0_35 = arith.constant 0 : index
    %c0_36 = arith.constant 0 : index
    %51 = vector.load %arg13[%c0_35, %c0_36] : memref<64x1xbf16, #tpu.memory_space<vmem>>, vector<64x1xbf16>
    %c0_37 = arith.constant 0 : index
    %c0_38 = arith.constant 0 : index
    %52 = vector.load %arg14[%c0_37, %c0_38] : memref<1x1xf32, #tpu.memory_space<vmem>>, vector<1x1xf32>
    %cst_39 = arith.constant dense<0.000000e+00> : vector<16x64xf32>
    %53 = tpu.matmul %0, %47, %cst_39 {dimension_numbers = #tpu.dot_dimension_numbers<[1], [0], [0], [1], [0, 0, 1, 1], [], []>} : vector<16x32xbf16>, vector<32x64xbf16>, vector<16x64xf32> -> vector<16x64xf32>
    %54 = vector.broadcast %48 : vector<1x64xf32> to vector<16x64xf32>
    %55 = arith.addf %53, %54 : vector<16x64xf32>
    %cst_40 = arith.constant 0.000000e+00 : f32
    %56 = vector.broadcast %cst_40 : f32 to vector<16x64xf32>
    %57 = arith.maximumf %55, %56 : vector<16x64xf32>
    %cst_41 = arith.constant dense<0.000000e+00> : vector<16xf32>
    %58 = vector.multi_reduction <add>, %57, %cst_41 [1] : vector<16x64xf32> to vector<16xf32>
    %59 = vector.shape_cast %58 : vector<16xf32> to vector<16x1xf32>
    %cst_42 = arith.constant 6.400000e+01 : f32
    %60 = vector.broadcast %cst_42 : f32 to vector<16x1xf32>
    %61 = arith.divf %59, %60 : vector<16x1xf32>
    %62 = arith.mulf %57, %57 : vector<16x64xf32>
    %cst_43 = arith.constant dense<0.000000e+00> : vector<16xf32>
    %63 = vector.multi_reduction <add>, %62, %cst_43 [1] : vector<16x64xf32> to vector<16xf32>
    %64 = vector.shape_cast %63 : vector<16xf32> to vector<16x1xf32>
    %cst_44 = arith.constant 6.400000e+01 : f32
    %65 = vector.broadcast %cst_44 : f32 to vector<16x1xf32>
    %66 = arith.divf %64, %65 : vector<16x1xf32>
    %67 = arith.mulf %61, %61 : vector<16x1xf32>
    %68 = arith.subf %66, %67 : vector<16x1xf32>
    %cst_45 = arith.constant 0.000000e+00 : f32
    %69 = vector.broadcast %cst_45 : f32 to vector<16x1xf32>
    %70 = arith.maximumf %68, %69 : vector<16x1xf32>
    %cst_46 = arith.constant 9.99999996E-13 : f32
    %71 = vector.broadcast %cst_46 : f32 to vector<16x1xf32>
    %72 = arith.addf %70, %71 : vector<16x1xf32>
    %73 = math.rsqrt %72 : vector<16x1xf32>
    %74 = vector.broadcast %61 : vector<16x1xf32> to vector<16x64xf32>
    %75 = arith.subf %57, %74 : vector<16x64xf32>
    %76 = vector.broadcast %73 : vector<16x1xf32> to vector<16x64xf32>
    %77 = arith.mulf %75, %76 : vector<16x64xf32>
    %78 = vector.broadcast %49 : vector<1x64xf32> to vector<16x64xf32>
    %79 = arith.mulf %77, %78 : vector<16x64xf32>
    %80 = vector.broadcast %50 : vector<1x64xf32> to vector<16x64xf32>
    %81 = arith.addf %79, %80 : vector<16x64xf32>
    %82 = arith.truncf %81 : vector<16x64xf32> to vector<16x64xbf16>
    %cst_47 = arith.constant dense<0.000000e+00> : vector<16x1xf32>
    %83 = tpu.matmul %82, %51, %cst_47 {dimension_numbers = #tpu.dot_dimension_numbers<[1], [0], [0], [1], [0, 0, 1, 1], [], []>} : vector<16x64xbf16>, vector<64x1xbf16>, vector<16x1xf32> -> vector<16x1xf32>
    %84 = vector.broadcast %52 : vector<1x1xf32> to vector<16x1xf32>
    %85 = arith.addf %83, %84 : vector<16x1xf32>
    %86 = arith.subf %85, %5 : vector<16x1xf32>
    %c0_48 = arith.constant 0 : index
    %c0_49 = arith.constant 0 : index
    %87 = vector.load %arg16[%c0_48, %c0_49] : memref<16x1xf32, #tpu.memory_space<vmem>>, vector<16x1xf32>
    tpu.vector_store %arg16[%c0_48, %c0_49], %86 {strides = array<i32>} : memref<16x1xf32, #tpu.memory_space<vmem>>, vector<16x1xf32>,
    return
  }
  func.func @transform_0(%arg0: i32) -> (i32, i32) {
    %c0_i32 = arith.constant 0 : i32
    %c0_i32_0 = arith.constant 0 : i32
    return %arg0, %c0_i32 : i32, i32
  }
  func.func @transform_1(%arg0: i32) -> (i32, i32) {
    %c0_i32 = arith.constant 0 : i32
    %c0_i32_0 = arith.constant 0 : i32
    return %arg0, %c0_i32 : i32, i32
  }
  func.func @transform_2(%arg0: i32) -> (i32, i32) {
    %c0_i32 = arith.constant 0 : i32
    %c0_i32_0 = arith.constant 0 : i32
    %c0_i32_1 = arith.constant 0 : i32
    return %c0_i32, %c0_i32_0 : i32, i32
  }
  func.func @transform_3(%arg0: i32) -> (i32, i32) {
    %c0_i32 = arith.constant 0 : i32
    %c0_i32_0 = arith.constant 0 : i32
    %c0_i32_1 = arith.constant 0 : i32
    return %c0_i32, %c0_i32_0 : i32, i32
  }
  func.func @transform_4(%arg0: i32) -> (i32, i32) {
    %c0_i32 = arith.constant 0 : i32
    %c0_i32_0 = arith.constant 0 : i32
    %c0_i32_1 = arith.constant 0 : i32
    return %c0_i32, %c0_i32_0 : i32, i32
  }
  func.func @transform_5(%arg0: i32) -> (i32, i32) {
    %c0_i32 = arith.constant 0 : i32
    %c0_i32_0 = arith.constant 0 : i32
    %c0_i32_1 = arith.constant 0 : i32
    return %c0_i32, %c0_i32_0 : i32, i32
  }
  func.func @transform_6(%arg0: i32) -> (i32, i32) {
    %c0_i32 = arith.constant 0 : i32
    %c0_i32_0 = arith.constant 0 : i32
    %c0_i32_1 = arith.constant 0 : i32
    return %c0_i32, %c0_i32_0 : i32, i32
  }
  func.func @transform_7(%arg0: i32) -> (i32, i32) {
    %c0_i32 = arith.constant 0 : i32
    %c0_i32_0 = arith.constant 0 : i32
    %c0_i32_1 = arith.constant 0 : i32
    return %c0_i32, %c0_i32_0 : i32, i32
  }
  func.func @transform_8(%arg0: i32) -> (i32, i32) {
    %c0_i32 = arith.constant 0 : i32
    %c0_i32_0 = arith.constant 0 : i32
    %c0_i32_1 = arith.constant 0 : i32
    return %c0_i32, %c0_i32_0 : i32, i32
  }
  func.func @transform_9(%arg0: i32) -> (i32, i32) {
    %c0_i32 = arith.constant 0 : i32
    %c0_i32_0 = arith.constant 0 : i32
    %c0_i32_1 = arith.constant 0 : i32
    return %c0_i32, %c0_i32_0 : i32, i32
  }
  func.func @transform_10(%arg0: i32) -> (i32, i32) {
    %c0_i32 = arith.constant 0 : i32
    %c0_i32_0 = arith.constant 0 : i32
    %c0_i32_1 = arith.constant 0 : i32
    return %c0_i32, %c0_i32_0 : i32, i32
  }
  func.func @transform_11(%arg0: i32) -> (i32, i32) {
    %c0_i32 = arith.constant 0 : i32
    %c0_i32_0 = arith.constant 0 : i32
    %c0_i32_1 = arith.constant 0 : i32
    return %c0_i32, %c0_i32_0 : i32, i32
  }
  func.func @transform_12(%arg0: i32) -> (i32, i32) {
    %c0_i32 = arith.constant 0 : i32
    %c0_i32_0 = arith.constant 0 : i32
    %c0_i32_1 = arith.constant 0 : i32
    return %c0_i32, %c0_i32_0 : i32, i32
  }
  func.func @transform_13(%arg0: i32) -> (i32, i32) {
    %c0_i32 = arith.constant 0 : i32
    %c0_i32_0 = arith.constant 0 : i32
    %c0_i32_1 = arith.constant 0 : i32
    return %c0_i32, %c0_i32_0 : i32, i32
  }
  func.func @transform_14(%arg0: i32) -> (i32, i32) {
    %c0_i32 = arith.constant 0 : i32
    %c0_i32_0 = arith.constant 0 : i32
    return %arg0, %c0_i32 : i32, i32
  }
  func.func @transform_15(%arg0: i32) -> (i32, i32) {
    %c0_i32 = arith.constant 0 : i32
    %c0_i32_0 = arith.constant 0 : i32
    return %arg0, %c0_i32 : i32, i32
  }
}

</mosaic_0001>

<llo_original>
// kernel: tpu_custom_call.1
$region0: #{tpu_custom_call.1}
  #allocation0 [shape = 'u32[]', space=smem, size = 0x4, offset = 0x4, fixed_abs, tag = 'smem constant byte address 0x4 - core index']
  #allocation1 [shape = 'u32[144,128]{1,0:T(1,128)}', space=vmem, size = 0x12000, scoped, tag = 'internal scratch']
  #allocation2 [shape = 'f32[1,1]{1,0:T(1,128)S(1)}', space=vmem, size = 0x200, scoped, tag = 'scoped memory for tpu_custom_call.1']
  #allocation3 [shape = 'f32[1,1]{1,0:T(1,128)S(1)}', space=vmem, size = 0x200, scoped, tag = 'scoped memory for tpu_custom_call.1']
  %s0 = inlined_call_operand.hbm [shape: bf16[16,32], index: 0, kind: input, shape index: {}]
  %s1 = inlined_call_operand.hbm [shape: f32[16,1], index: 1, kind: input, shape index: {}]
  %s2 = inlined_call_operand.hbm [shape: bf16[32,64], index: 2, kind: input, shape index: {}]
  %s3 = inlined_call_operand.hbm [shape: f32[1,64], index: 3, kind: input, shape index: {}]
  %s4 = inlined_call_operand.hbm [shape: f32[1,64], index: 4, kind: input, shape index: {}]
  %s5 = inlined_call_operand.hbm [shape: f32[1,64], index: 5, kind: input, shape index: {}]
  %s6 = inlined_call_operand.hbm [shape: bf16[64,1], index: 6, kind: input, shape index: {}]
  %s7 = inlined_call_operand.<no memory space> [shape: f32[1,1], index: 7, kind: input, shape index: {}]
  %s8 = inlined_call_operand.hbm [shape: bf16[32,64], index: 8, kind: input, shape index: {}]
  %s9 = inlined_call_operand.hbm [shape: f32[1,64], index: 9, kind: input, shape index: {}]
  %s10 = inlined_call_operand.hbm [shape: f32[1,64], index: 10, kind: input, shape index: {}]
  %s11 = inlined_call_operand.hbm [shape: f32[1,64], index: 11, kind: input, shape index: {}]
  %s12 = inlined_call_operand.hbm [shape: bf16[64,1], index: 12, kind: input, shape index: {}]
  %s13 = inlined_call_operand.<no memory space> [shape: f32[1,1], index: 13, kind: input, shape index: {}]
  %s14 = inlined_call_operand.hbm [shape: f32[16,1], index: 14, kind: output, shape index: {0}]
  %s15 = inlined_call_operand.hbm [shape: f32[16,1], index: 15, kind: output, shape index: {1}]
  %16 = xla_tuple %s14, %s15
  %s17 = sld [smem:[#allocation0]]
  $region122: #{tpu_custom_call.1} parent=0
    _
  %s19 = ssub.s32 1, %s17
  %s20 = scalar_select 0, %s19, %s17
  %v21 = vstv %s7
  %22 = vst [vmem:[#allocation2] sm:$0x1] %v21
  %v23 = vstv %s13
  %24 = vst [vmem:[#allocation3] sm:$0x1] %v23
  $region1: #{tpu_custom_call.1} parent=0
    #allocation4 [shape = 'u8[4096]{0}', space=vmem, size = 0x1000, scoped, tag = 'input window, operand 0, single buffered']
    #allocation5 [shape = 's32[1]{0}', space=sflag, size = 0x4, scoped, tag = 'scoped memory for tpu_custom_call.1']
    #allocation6 [shape = 's32[1]{0}', space=sflag, size = 0x4, scoped, tag = 'scoped memory for tpu_custom_call.1']
    #allocation7 [shape = 'u8[8192]{0}', space=vmem, size = 0x2000, scoped, tag = 'input window, operand 1, single buffered']
    #allocation8 [shape = 's32[1]{0}', space=sflag, size = 0x4, scoped, tag = 'scoped memory for tpu_custom_call.1']
    #allocation9 [shape = 'u8[8192]{0}', space=vmem, size = 0x2000, scoped, tag = 'input window, operand 2, single buffered']
    #allocation10 [shape = 'u8[512]{0}', space=vmem, size = 0x400, scoped, tag = 'input window, operand 3, single buffered']
    #allocation11 [shape = 's32[1]{0}', space=sflag, size = 0x4, scoped, tag = 'scoped memory for tpu_custom_call.1']
    #allocation12 [shape = 'u8[512]{0}', space=vmem, size = 0x400, scoped, tag = 'input window, operand 4, single buffered']
    #allocation13 [shape = 'u8[512]{0}', space=vmem, size = 0x400, scoped, tag = 'input window, operand 5, single buffered']
    #allocation14 [shape = 's32[1]{0}', space=sflag, size = 0x4, scoped, tag = 'scoped memory for tpu_custom_call.1']
    #allocation15 [shape = 'u8[16384]{0}', space=vmem, size = 0x4000, scoped, tag = 'input window, operand 6, single buffered']
    #allocation16 [shape = 'u8[8192]{0}', space=vmem, size = 0x2000, scoped, tag = 'input window, operand 8, single buffered']
    #allocation17 [shape = 's32[1]{0}', space=sflag, size = 0x4, scoped, tag = 'scoped memory for tpu_custom_call.1']
    #allocation18 [shape = 'u8[512]{0}', space=vmem, size = 0x400, scoped, tag = 'input window, operand 9, single buffered']
    #allocation19 [shape = 'u8[512]{0}', space=vmem, size = 0x400, scoped, tag = 'input window, operand 10, single buffered']
    #allocation20 [shape = 's32[1]{0}', space=sflag, size = 0x4, scoped, tag = 'scoped memory for tpu_custom_call.1']
    #allocation21 [shape = 'u8[512]{0}', space=vmem, size = 0x400, scoped, tag = 'input window, operand 11, single buffered']
    #allocation22 [shape = 'u8[16384]{0}', space=vmem, size = 0x4000, scoped, tag = 'input window, operand 12, single buffered']
    #allocation23 [shape = 's32[1]{0}', space=sflag, size = 0x4, scoped, tag = 'scoped memory for tpu_custom_call.1']
    #allocation24 [shape = 'u8[8192]{0}', space=vmem, size = 0x2000, scoped, tag = 'output window, operand 0, single buffered']
    #allocation25 [shape = 'u8[8192]{0}', space=vmem, size = 0x2000, scoped, tag = 'output window, operand 1, single buffered']
    #allocation26 [shape = 's32[1]{0}', space=sflag, size = 0x4, scoped, tag = 'scoped memory for tpu_custom_call.1']
    %25 = vsyncpa [#allocation5], 0
    %26 = vsyncpa [#allocation8], 0
    %27 = vsyncpa [#allocation11], 0
    %28 = vsyncpa [#allocation14], 0
    %29 = vsyncpa [#allocation17], 0
    %30 = vsyncpa [#allocation20], 0
    %31 = vsyncpa [#allocation23], 0
    %32 = vsyncpa [#allocation6], 0
    %33 = vsyncpa [#allocation26], 0
    // Predicated region
    $region2: #{tpu_custom_call.1} parent=1 // pred_check
      _
    $region3: #{tpu_custom_call.1} parent=1 // pred_check_branch
      %35 = sbr.rel (0) target = $region5
    $region4: #{tpu_custom_call.1} parent=1 // pred_region
      %s37 = ssub.s32 128, 128
      %38 = vsyncadd [#allocation5], %s37
      %s39 = sshll.u32 [#allocation4], 4
      %s40 = int_to_ptr.vmem [resolvable:$true] %s39
      %45 = dma.hbm_to_vmem [thread:$0]  %s0, 128, %s40, [#allocation5], 64, 64, 4
    $region5: #{tpu_custom_call.1} parent=1 // pred_fallthru
      _
    // Predicated region
    $region6: #{tpu_custom_call.1} parent=1 // pred_check
      _
    $region7: #{tpu_custom_call.1} parent=1 // pred_check_branch
      %47 = sbr.rel (0) target = $region9
    $region8: #{tpu_custom_call.1} parent=1 // pred_region
      %s49 = ssub.s32 256, 256
      %50 = vsyncadd [#allocation8], %s49
      %s51 = sshll.u32 [#allocation7], 4
      %s52 = int_to_ptr.vmem [resolvable:$true] %s51
      %57 = dma.hbm_to_vmem [thread:$0]  %s1, 256, %s52, [#allocation8], 128, 128, 8
    $region9: #{tpu_custom_call.1} parent=1 // pred_fallthru
      _
    // Predicated region
    $region10: #{tpu_custom_call.1} parent=1 // pred_check
      _
    $region11: #{tpu_custom_call.1} parent=1 // pred_check_branch
      %59 = sbr.rel (0) target = $region13
    $region12: #{tpu_custom_call.1} parent=1 // pred_region
      %s61 = ssub.s32 256, 256
      %62 = vsyncadd [#allocation8], %s61
      %s63 = sshll.u32 [#allocation9], 4
      %s64 = int_to_ptr.vmem [resolvable:$true] %s63
      %69 = dma.hbm_to_vmem [thread:$0]  %s2, 256, %s64, [#allocation8], 64, 64, 4
    $region13: #{tpu_custom_call.1} parent=1 // pred_fallthru
      _
    // Predicated region
    $region14: #{tpu_custom_call.1} parent=1 // pred_check
      _
    $region15: #{tpu_custom_call.1} parent=1 // pred_check_branch
      %71 = sbr.rel (0) target = $region17
    $region16: #{tpu_custom_call.1} parent=1 // pred_region
      %s73 = ssub.s32 16, 16
      %74 = vsyncadd [#allocation11], %s73
      %s76 = sshll.u32 [#allocation10], 4
      %s77 = int_to_ptr.vmem [resolvable:$true] %s76
      %79 = dma.hbm_to_vmem [thread:$0]  %s3, 16, %s77, [#allocation11]
    $region17: #{tpu_custom_call.1} parent=1 // pred_fallthru
      _
    // Predicated region
    $region18: #{tpu_custom_call.1} parent=1 // pred_check
      _
    $region19: #{tpu_custom_call.1} parent=1 // pred_check_branch
      %81 = sbr.rel (0) target = $region21
    $region20: #{tpu_custom_call.1} parent=1 // pred_region
      %s83 = ssub.s32 16, 16
      %84 = vsyncadd [#allocation11], %s83
      %s86 = sshll.u32 [#allocation12], 4
      %s87 = int_to_ptr.vmem [resolvable:$true] %s86
      %89 = dma.hbm_to_vmem [thread:$0]  %s4, 16, %s87, [#allocation11]
    $region21: #{tpu_custom_call.1} parent=1 // pred_fallthru
      _
    // Predicated region
    $region22: #{tpu_custom_call.1} parent=1 // pred_check
      _
    $region23: #{tpu_custom_call.1} parent=1 // pred_check_branch
      %91 = sbr.rel (0) target = $region25
    $region24: #{tpu_custom_call.1} parent=1 // pred_region
      %s93 = ssub.s32 16, 16
      %94 = vsyncadd [#allocation14], %s93
      %s96 = sshll.u32 [#allocation13], 4
      %s97 = int_to_ptr.vmem [resolvable:$true] %s96
      %99 = dma.hbm_to_vmem [thread:$0]  %s5, 16, %s97, [#allocation14]
    $region25: #{tpu_custom_call.1} parent=1 // pred_fallthru
      _
    // Predicated region
    $region26: #{tpu_custom_call.1} parent=1 // pred_check
      _
    $region27: #{tpu_custom_call.1} parent=1 // pred_check_branch
      %101 = sbr.rel (0) target = $region29
    $region28: #{tpu_custom_call.1} parent=1 // pred_region
      %s103 = ssub.s32 512, 512
      %104 = vsyncadd [#allocation14], %s103
      %s105 = sshll.u32 [#allocation15], 4
      %s106 = int_to_ptr.vmem [resolvable:$true] %s105
      %111 = dma.hbm_to_vmem [thread:$0]  %s6, 512, %s106, [#allocation14], 64, 64, 4
    $region29: #{tpu_custom_call.1} parent=1 // pred_fallthru
      _
    // Predicated region
    $region30: #{tpu_custom_call.1} parent=1 // pred_check
      _
    $region31: #{tpu_custom_call.1} parent=1 // pred_check_branch
      %113 = sbr.rel (0) target = $region33
    $region32: #{tpu_custom_call.1} parent=1 // pred_region
      _
    $region33: #{tpu_custom_call.1} parent=1 // pred_fallthru
      _
    // Predicated region
    $region34: #{tpu_custom_call.1} parent=1 // pred_check
      _
    $region35: #{tpu_custom_call.1} parent=1 // pred_check_branch
      %115 = sbr.rel (0) target = $region37
    $region36: #{tpu_custom_call.1} parent=1 // pred_region
      %s117 = ssub.s32 256, 256
      %118 = vsyncadd [#allocation17], %s117
      %s119 = sshll.u32 [#allocation16], 4
      %s120 = int_to_ptr.vmem [resolvable:$true] %s119
      %125 = dma.hbm_to_vmem [thread:$0]  %s8, 256, %s120, [#allocation17], 64, 64, 4
    $region37: #{tpu_custom_call.1} parent=1 // pred_fallthru
      _
    // Predicated region
    $region38: #{tpu_custom_call.1} parent=1 // pred_check
      _
    $region39: #{tpu_custom_call.1} parent=1 // pred_check_branch
      %127 = sbr.rel (0) target = $region41
    $region40: #{tpu_custom_call.1} parent=1 // pred_region
      %s129 = ssub.s32 16, 16
      %130 = vsyncadd [#allocation17], %s129
      %s132 = sshll.u32 [#allocation18], 4
      %s133 = int_to_ptr.vmem [resolvable:$true] %s132
      %135 = dma.hbm_to_vmem [thread:$0]  %s9, 16, %s133, [#allocation17]
    $region41: #{tpu_custom_call.1} parent=1 // pred_fallthru
      _
    // Predicated region
    $region42: #{tpu_custom_call.1} parent=1 // pred_check
      _
    $region43: #{tpu_custom_call.1} parent=1 // pred_check_branch
      %137 = sbr.rel (0) target = $region45
    $region44: #{tpu_custom_call.1} parent=1 // pred_region
      %s139 = ssub.s32 16, 16
      %140 = vsyncadd [#allocation20], %s139
      %s142 = sshll.u32 [#allocation19], 4
      %s143 = int_to_ptr.vmem [resolvable:$true] %s142
      %145 = dma.hbm_to_vmem [thread:$0]  %s10, 16, %s143, [#allocation20]
    $region45: #{tpu_custom_call.1} parent=1 // pred_fallthru
      _
    // Predicated region
    $region46: #{tpu_custom_call.1} parent=1 // pred_check
      _
    $region47: #{tpu_custom_call.1} parent=1 // pred_check_branch
      %147 = sbr.rel (0) target = $region49
    $region48: #{tpu_custom_call.1} parent=1 // pred_region
      %s149 = ssub.s32 16, 16
      %150 = vsyncadd [#allocation20], %s149
      %s152 = sshll.u32 [#allocation21], 4
      %s153 = int_to_ptr.vmem [resolvable:$true] %s152
      %155 = dma.hbm_to_vmem [thread:$0]  %s11, 16, %s153, [#allocation20]
    $region49: #{tpu_custom_call.1} parent=1 // pred_fallthru
      _
    // Predicated region
    $region50: #{tpu_custom_call.1} parent=1 // pred_check
      _
    $region51: #{tpu_custom_call.1} parent=1 // pred_check_branch
      %157 = sbr.rel (0) target = $region53
    $region52: #{tpu_custom_call.1} parent=1 // pred_region
      %s159 = ssub.s32 512, 512
      %160 = vsyncadd [#allocation23], %s159
      %s161 = sshll.u32 [#allocation22], 4
      %s162 = int_to_ptr.vmem [resolvable:$true] %s161
      %167 = dma.hbm_to_vmem [thread:$0]  %s12, 512, %s162, [#allocation23], 64, 64, 4
    $region53: #{tpu_custom_call.1} parent=1 // pred_fallthru
      _
    // Predicated region
    $region54: #{tpu_custom_call.1} parent=1 // pred_check
      _
    $region55: #{tpu_custom_call.1} parent=1 // pred_check_branch
      %169 = sbr.rel (0) target = $region57
    $region56: #{tpu_custom_call.1} parent=1 // pred_region
      _
    $region57: #{tpu_custom_call.1} parent=1 // pred_fallthru
      _
    // Predicated region
    $region58: #{tpu_custom_call.1} parent=1 // pred_check
      _
    $region59: #{tpu_custom_call.1} parent=1 // pred_check_branch
      %171 = sbr.rel (0) target = $region61
    $region60: #{tpu_custom_call.1} parent=1 // pred_region
      %172 = dma.done [#allocation5], 128
    $region61: #{tpu_custom_call.1} parent=1 // pred_fallthru
      _
    // Predicated region
    $region62: #{tpu_custom_call.1} parent=1 // pred_check
      _
    $region63: #{tpu_custom_call.1} parent=1 // pred_check_branch
      %174 = sbr.rel (0) target = $region65
    $region64: #{tpu_custom_call.1} parent=1 // pred_region
      %175 = dma.done [#allocation8], 256
    $region65: #{tpu_custom_call.1} parent=1 // pred_fallthru
      _
    // Predicated region
    $region66: #{tpu_custom_call.1} parent=1 // pred_check
      _
    $region67: #{tpu_custom_call.1} parent=1 // pred_check_branch
      %177 = sbr.rel (0) target = $region69
    $region68: #{tpu_custom_call.1} parent=1 // pred_region
      %178 = dma.done [#allocation8], 256
    $region69: #{tpu_custom_call.1} parent=1 // pred_fallthru
      _
    // Predicated region
    $region70: #{tpu_custom_call.1} parent=1 // pred_check
      _
    $region71: #{tpu_custom_call.1} parent=1 // pred_check_branch
      %180 = sbr.rel (0) target = $region73
    $region72: #{tpu_custom_call.1} parent=1 // pred_region
      %181 = dma.done [#allocation11], 16
    $region73: #{tpu_custom_call.1} parent=1 // pred_fallthru
      _
    // Predicated region
    $region74: #{tpu_custom_call.1} parent=1 // pred_check
      _
    $region75: #{tpu_custom_call.1} parent=1 // pred_check_branch
      %183 = sbr.rel (0) target = $region77
    $region76: #{tpu_custom_call.1} parent=1 // pred_region
      %184 = dma.done [#allocation11], 16
    $region77: #{tpu_custom_call.1} parent=1 // pred_fallthru
      _
    // Predicated region
    $region78: #{tpu_custom_call.1} parent=1 // pred_check
      _
    $region79: #{tpu_custom_call.1} parent=1 // pred_check_branch
      %186 = sbr.rel (0) target = $region81
    $region80: #{tpu_custom_call.1} parent=1 // pred_region
      %187 = dma.done [#allocation14], 16
    $region81: #{tpu_custom_call.1} parent=1 // pred_fallthru
      _
    // Predicated region
    $region82: #{tpu_custom_call.1} parent=1 // pred_check
      _
    $region83: #{tpu_custom_call.1} parent=1 // pred_check_branch
      %189 = sbr.rel (0) target = $region85
    $region84: #{tpu_custom_call.1} parent=1 // pred_region
      %190 = dma.done [#allocation14], 512
    $region85: #{tpu_custom_call.1} parent=1 // pred_fallthru
      _
    // Predicated region
    $region86: #{tpu_custom_call.1} parent=1 // pred_check
      _
    $region87: #{tpu_custom_call.1} parent=1 // pred_check_branch
      %192 = sbr.rel (0) target = $region89
    $region88: #{tpu_custom_call.1} parent=1 // pred_region
      %193 = dma.done [#allocation17], 256
    $region89: #{tpu_custom_call.1} parent=1 // pred_fallthru
      _
    // Predicated region
    $region90: #{tpu_custom_call.1} parent=1 // pred_check
      _
    $region91: #{tpu_custom_call.1} parent=1 // pred_check_branch
      %195 = sbr.rel (0) target = $region93
    $region92: #{tpu_custom_call.1} parent=1 // pred_region
      %196 = dma.done [#allocation17], 16
    $region93: #{tpu_custom_call.1} parent=1 // pred_fallthru
      _
    // Predicated region
    $region94: #{tpu_custom_call.1} parent=1 // pred_check
      _
    $region95: #{tpu_custom_call.1} parent=1 // pred_check_branch
      %198 = sbr.rel (0) target = $region97
    $region96: #{tpu_custom_call.1} parent=1 // pred_region
      %199 = dma.done [#allocation20], 16
    $region97: #{tpu_custom_call.1} parent=1 // pred_fallthru
      _
    // Predicated region
    $region98: #{tpu_custom_call.1} parent=1 // pred_check
      _
    $region99: #{tpu_custom_call.1} parent=1 // pred_check_branch
      %201 = sbr.rel (0) target = $region101
    $region100: #{tpu_custom_call.1} parent=1 // pred_region
      %202 = dma.done [#allocation20], 16
    $region101: #{tpu_custom_call.1} parent=1 // pred_fallthru
      _
    // Predicated region
    $region102: #{tpu_custom_call.1} parent=1 // pred_check
      _
    $region103: #{tpu_custom_call.1} parent=1 // pred_check_branch
      %204 = sbr.rel (0) target = $region105
    $region104: #{tpu_custom_call.1} parent=1 // pred_region
      %205 = dma.done [#allocation23], 512
    $region105: #{tpu_custom_call.1} parent=1 // pred_fallthru
      _
    %v207 = vld [vmem:[#allocation4] sm:$0xf]
    %v208 = vld [vmem:[#allocation4 + $0x4] sm:$0xf]
    %v209 = vld [vmem:[#allocation7] sm:$0xff]
    %v210 = vld [vmem:[#allocation7 + $0x8] sm:$0xff]
    %v211 = vsub.f32 1.0, %v209
    %v212 = vsub.f32 1.0, %v210
    %v213 = vmul.f32 %v211, 1e+30
    %v214 = vmul.f32 %v212, 1e+30
    %v215 = vld [vmem:[#allocation9] sm:$0xf]
    %v216 = vld [vmem:[#allocation9 + $0x4] sm:$0xf]
    %v217 = vld [vmem:[#allocation9 + $0x8] sm:$0xf]
    %v218 = vld [vmem:[#allocation9 + $0xc] sm:$0xf]
    %v219 = vld [vmem:[#allocation10] sm:$0x1]
    %v220 = vld [vmem:[#allocation12] sm:$0x1]
    %v221 = vld [vmem:[#allocation13] sm:$0x1]
    %v222 = vld [vmem:[#allocation15] sm:$0xf]
    %v223 = vld [vmem:[#allocation15 + $0x4] sm:$0xf]
    %v224 = vld [vmem:[#allocation15 + $0x8] sm:$0xf]
    %v225 = vld [vmem:[#allocation15 + $0xc] sm:$0xf]
    %v226 = vld [vmem:[#allocation15 + $0x10] sm:$0xf]
    %v227 = vld [vmem:[#allocation15 + $0x14] sm:$0xf]
    %v228 = vld [vmem:[#allocation15 + $0x18] sm:$0xf]
    %v229 = vld [vmem:[#allocation15 + $0x1c] sm:$0xf]
    %v230 = vld [vmem:[#allocation2] sm:$0x1]
    %v232 = vlaneseq
    %v233 = vshrl.u32 %v232, 7
    %v234 = vsub.s32 0, %v233
    %v235 = vrot.slane %v219, %v234
    %v239 = vunpack.c.l.b16 %v207
    %v240 = vunpack.c.l.b16 %v208
    %v241 = vpack.c.b16 %v240, %v239
    %v246 = vunpack.c.l.b16 %v215
    %v247 = vunpack.c.l.b16 %v216
    %v248 = vunpack.c.l.b16 %v217
    %v249 = vunpack.c.l.b16 %v218
    %v250 = vpack.c.b16 %v247, %v246
    %v251 = vpack.c.b16 %v249, %v248
    %vm254 = vcmask 261120
    %v256 = vsel %vm254, %v241, 0
    %258 = vmatprep.subr.bf16.mxu0 0
    %259 = vmatpush1.bf16.msra.mxu0 %v250
    %260 = vmatprep.subr.bf16.mxu0 0
    %261 = vmatpush1.bf16.msra.mxu0 %v251
    %262 = vmatprep.subr.bf16.mxu0 0
    %263 = vmatpush1.bf16.msra.mxu0 0
    %264 = vmatprep.subr.bf16.mxu0 0
    %265 = vmatpush1.bf16.msra.mxu0 0
    %266 = vmatprep.subr.bf16.mxu0 0
    %267 = vmatpush1.bf16.msra.mxu0 0
    %268 = vmatprep.subr.bf16.mxu0 0
    %269 = vmatpush1.bf16.msra.mxu0 0
    %270 = vmatprep.subr.bf16.mxu0 0
    %271 = vmatpush1.bf16.msra.mxu0 0
    %272 = vmatprep.subr.bf16.mxu0 0
    %273 = vmatpush1.bf16.msra.mxu0 0
    %274 = vmatprep.subr.bf16.mxu0 0
    %275 = vmatpush1.bf16.msra.mxu0 0
    %276 = vmatprep.subr.bf16.mxu0 0
    %277 = vmatpush1.bf16.msra.mxu0 0
    %278 = vmatprep.subr.bf16.mxu0 0
    %279 = vmatpush1.bf16.msra.mxu0 0
    %280 = vmatprep.subr.bf16.mxu0 0
    %281 = vmatpush1.bf16.msra.mxu0 0
    %282 = vmatprep.subr.bf16.mxu0 0
    %283 = vmatpush1.bf16.msra.mxu0 0
    %284 = vmatprep.subr.bf16.mxu0 0
    %285 = vmatpush1.bf16.msra.mxu0 0
    %286 = vmatprep.subr.bf16.mxu0 0
    %287 = vmatpush1.bf16.msra.mxu0 0
    %288 = vmatprep.subr.bf16.mxu0 0
    %289 = vmatpush1.bf16.msra.mxu0 0
    %290 = vmatprep.mubr.bf16.mxu0 0
    %291 = vmatmul.mubr.bf16.gmra.mrb[0].mxu0 %v256
    %v292 = vpop.f32.mrb[0].mxu0
    %v293 = vadd.f32 %v235, %v292
    %v294 = vpop.f32.mrb[0].mxu0
    %v295 = vpop.f32.mrb[0].mxu0
    %v296 = vadd.f32 %v235, %v295
    %v297 = vpop.f32.mrb[0].mxu0
    %298 = vdwg.mxu0
    %v299 = vmax.f32 %v293, 0.0
    %v300 = vmax.f32 %v296, 0.0
    %vm301 = vcmask 523264
    %v302 = vsel %vm301, %v299, 0.0
    %303 = vadd.xlane.f32.xlu0 %v302
    %v304 = vpop.xlane.xlu0 %303
    %v305 = vsel %vm301, %v300, 0.0
    %306 = vadd.xlane.f32.xlu0 %v305
    %v307 = vpop.xlane.xlu0 %306
    %v308 = vrcp.pop 64.0
    %v309 = vmul.f32 %v304, %v308
    %v310 = vmul.f32 %v307, %v308
    %v311 = vmul.f32 %v299, %v299
    %v312 = vmul.f32 %v300, %v300
    %v313 = vsel %vm301, %v311, 0.0
    %314 = vadd.xlane.f32.xlu0 %v313
    %v315 = vpop.xlane.xlu0 %314
    %v316 = vsel %vm301, %v312, 0.0
    %317 = vadd.xlane.f32.xlu0 %v316
    %v318 = vpop.xlane.xlu0 %317
    %v319 = vmul.f32 %v315, %v308
    %v320 = vmul.f32 %v318, %v308
    %v321 = vmul.f32 %v309, %v309
    %v322 = vmul.f32 %v310, %v310
    %v323 = vsub.f32 %v319, %v321
    %v324 = vsub.f32 %v320, %v322
    %v325 = vmax.f32 %v323, 0.0
    %v326 = vmax.f32 %v324, 0.0
    %v327 = vadd.f32 %v325, 1e-12
    %v328 = vadd.f32 %v326, 1e-12
    %v329 = vrsqrt.pop %v327
    %v330 = vrsqrt.pop %v328
    %v331 = vsub.f32 %v299, %v309
    %v332 = vsub.f32 %v300, %v310
    %v333 = vmul.f32 %v331, %v329
    %v334 = vmul.f32 %v332, %v330
    %v336 = vlaneseq
    %v337 = vshrl.u32 %v336, 7
    %v338 = vsub.s32 0, %v337
    %v339 = vrot.slane %v220, %v338
    %v341 = vmul.f32 %v333, %v339
    %v342 = vmul.f32 %v334, %v339
    %v344 = vlaneseq
    %v345 = vshrl.u32 %v344, 7
    %v346 = vsub.s32 0, %v345
    %v347 = vrot.slane %v221, %v346
    %v349 = vadd.f32 %v341, %v347
    %v350 = vadd.f32 %v342, %v347
    %v351 = vpack.c.bf16 %v350, %v349
    %v353 = vlaneseq
    %v354 = vshrl.u32 %v353, 7
    %v355 = vsub.s32 0, %v354
    %v356 = vrot.slane %v230, %v355
    %v366 = vunpack.c.l.b16 %v222
    %v367 = vunpack.c.l.b16 %v223
    %v368 = vunpack.c.l.b16 %v224
    %v369 = vunpack.c.l.b16 %v225
    %v370 = vunpack.c.l.b16 %v226
    %v371 = vunpack.c.l.b16 %v227
    %v372 = vunpack.c.l.b16 %v228
    %v373 = vunpack.c.l.b16 %v229
    %v374 = vpack.c.b16 %v367, %v366
    %v375 = vpack.c.b16 %v369, %v368
    %v376 = vpack.c.b16 %v371, %v370
    %v377 = vpack.c.b16 %v373, %v372
    %v383 = vsel %vm301, %v351, 0
    %385 = vmatprep.subr.bf16.mxu0 0
    %386 = vmatpush1.bf16.msra.mxu0 %v374
    %387 = vmatprep.subr.bf16.mxu0 0
    %388 = vmatpush1.bf16.msra.mxu0 %v375
    %389 = vmatprep.subr.bf16.mxu0 0
    %390 = vmatpush1.bf16.msra.mxu0 %v376
    %391 = vmatprep.subr.bf16.mxu0 0
    %392 = vmatpush1.bf16.msra.mxu0 %v377
    %393 = vmatprep.subr.bf16.mxu0 0
    %394 = vmatpush1.bf16.msra.mxu0 0
    %395 = vmatprep.subr.bf16.mxu0 0
    %396 = vmatpush1.bf16.msra.mxu0 0
    %397 = vmatprep.subr.bf16.mxu0 0
    %398 = vmatpush1.bf16.msra.mxu0 0
    %399 = vmatprep.subr.bf16.mxu0 0
    %400 = vmatpush1.bf16.msra.mxu0 0
    %401 = vmatprep.subr.bf16.mxu0 0
    %402 = vmatpush1.bf16.msra.mxu0 0
    %403 = vmatprep.subr.bf16.mxu0 0
    %404 = vmatpush1.bf16.msra.mxu0 0
    %405 = vmatprep.subr.bf16.mxu0 0
    %406 = vmatpush1.bf16.msra.mxu0 0
    %407 = vmatprep.subr.bf16.mxu0 0
    %408 = vmatpush1.bf16.msra.mxu0 0
    %409 = vmatprep.subr.bf16.mxu0 0
    %410 = vmatpush1.bf16.msra.mxu0 0
    %411 = vmatprep.subr.bf16.mxu0 0
    %412 = vmatpush1.bf16.msra.mxu0 0
    %413 = vmatprep.subr.bf16.mxu0 0
    %414 = vmatpush1.bf16.msra.mxu0 0
    %415 = vmatprep.subr.bf16.mxu0 0
    %416 = vmatpush1.bf16.msra.mxu0 0
    %417 = vmatprep.mubr.bf16.mxu0 0
    %418 = vmatmul.mubr.bf16.gmra.mrb[0].mxu0 %v383
    %v419 = vpop.f32.mrb[0].mxu0
    %v420 = vadd.f32 %v356, %v419
    %v421 = vpop.f32.mrb[0].mxu0
    %v422 = vpop.f32.mrb[0].mxu0
    %v423 = vadd.f32 %v356, %v422
    %v424 = vpop.f32.mrb[0].mxu0
    %425 = vdwg.mxu0
    %v426 = vsub.f32 %v420, %v213
    %v427 = vsub.f32 %v423, %v214
    %vm428 = vcmask 7168
    %429 = vst.msk [vmem:[#allocation24] sm:$0xff] %vm428, %v426
    %430 = vst.msk [vmem:[#allocation24 + $0x8] sm:$0xff] %vm428, %v427
    %v431 = vld [vmem:[#allocation16] sm:$0xf]
    %v432 = vld [vmem:[#allocation16 + $0x4] sm:$0xf]
    %v433 = vld [vmem:[#allocation16 + $0x8] sm:$0xf]
    %v434 = vld [vmem:[#allocation16 + $0xc] sm:$0xf]
    %v435 = vld [vmem:[#allocation18] sm:$0x1]
    %v436 = vld [vmem:[#allocation19] sm:$0x1]
    %v437 = vld [vmem:[#allocation21] sm:$0x1]
    %v438 = vld [vmem:[#allocation22] sm:$0xf]
    %v439 = vld [vmem:[#allocation22 + $0x4] sm:$0xf]
    %v440 = vld [vmem:[#allocation22 + $0x8] sm:$0xf]
    %v441 = vld [vmem:[#allocation22 + $0xc] sm:$0xf]
    %v442 = vld [vmem:[#allocation22 + $0x10] sm:$0xf]
    %v443 = vld [vmem:[#allocation22 + $0x14] sm:$0xf]
    %v444 = vld [vmem:[#allocation22 + $0x18] sm:$0xf]
    %v445 = vld [vmem:[#allocation22 + $0x1c] sm:$0xf]
    %v446 = vld [vmem:[#allocation3] sm:$0x1]
    %v448 = vlaneseq
    %v449 = vshrl.u32 %v448, 7
    %v450 = vsub.s32 0, %v449
    %v451 = vrot.slane %v435, %v450
    %v457 = vunpack.c.l.b16 %v431
    %v458 = vunpack.c.l.b16 %v432
    %v459 = vunpack.c.l.b16 %v433
    %v460 = vunpack.c.l.b16 %v434
    %v461 = vpack.c.b16 %v458, %v457
    %v462 = vpack.c.b16 %v460, %v459
    %465 = vmatprep.subr.bf16.mxu0 0
    %466 = vmatpush1.bf16.msra.mxu0 %v461
    %467 = vmatprep.subr.bf16.mxu0 0
    %468 = vmatpush1.bf16.msra.mxu0 %v462
    %469 = vmatprep.subr.bf16.mxu0 0
    %470 = vmatpush1.bf16.msra.mxu0 0
    %471 = vmatprep.subr.bf16.mxu0 0
    %472 = vmatpush1.bf16.msra.mxu0 0
    %473 = vmatprep.subr.bf16.mxu0 0
    %474 = vmatpush1.bf16.msra.mxu0 0
    %475 = vmatprep.subr.bf16.mxu0 0
    %476 = vmatpush1.bf16.msra.mxu0 0
    %477 = vmatprep.subr.bf16.mxu0 0
    %478 = vmatpush1.bf16.msra.mxu0 0
    %479 = vmatprep.subr.bf16.mxu0 0
    %480 = vmatpush1.bf16.msra.mxu0 0
    %481 = vmatprep.subr.bf16.mxu0 0
    %482 = vmatpush1.bf16.msra.mxu0 0
    %483 = vmatprep.subr.bf16.mxu0 0
    %484 = vmatpush1.bf16.msra.mxu0 0
    %485 = vmatprep.subr.bf16.mxu0 0
    %486 = vmatpush1.bf16.msra.mxu0 0
    %487 = vmatprep.subr.bf16.mxu0 0
    %488 = vmatpush1.bf16.msra.mxu0 0
    %489 = vmatprep.subr.bf16.mxu0 0
    %490 = vmatpush1.bf16.msra.mxu0 0
    %491 = vmatprep.subr.bf16.mxu0 0
    %492 = vmatpush1.bf16.msra.mxu0 0
    %493 = vmatprep.subr.bf16.mxu0 0
    %494 = vmatpush1.bf16.msra.mxu0 0
    %495 = vmatprep.subr.bf16.mxu0 0
    %496 = vmatpush1.bf16.msra.mxu0 0
    %497 = vmatprep.mubr.bf16.mxu0 0
    %498 = vmatmul.mubr.bf16.gmra.mrb[0].mxu0 %v256
    %v499 = vpop.f32.mrb[0].mxu0
    %v500 = vadd.f32 %v451, %v499
    %v501 = vpop.f32.mrb[0].mxu0
    %v502 = vpop.f32.mrb[0].mxu0
    %v503 = vadd.f32 %v451, %v502
    %v504 = vpop.f32.mrb[0].mxu0
    %505 = vdwg.mxu0
    %v506 = vmax.f32 %v500, 0.0
    %v507 = vmax.f32 %v503, 0.0
    %v508 = vsel %vm301, %v506, 0.0
    %509 = vadd.xlane.f32.xlu0 %v508
    %v510 = vpop.xlane.xlu0 %509
    %v511 = vsel %vm301, %v507, 0.0
    %512 = vadd.xlane.f32.xlu0 %v511
    %v513 = vpop.xlane.xlu0 %512
    %v514 = vmul.f32 %v510, %v308
    %v515 = vmul.f32 %v513, %v308
    %v516 = vmul.f32 %v506, %v506
    %v517 = vmul.f32 %v507, %v507
    %v518 = vsel %vm301, %v516, 0.0
    %519 = vadd.xlane.f32.xlu0 %v518
    %v520 = vpop.xlane.xlu0 %519
    %v521 = vsel %vm301, %v517, 0.0
    %522 = vadd.xlane.f32.xlu0 %v521
    %v523 = vpop.xlane.xlu0 %522
    %v524 = vmul.f32 %v520, %v308
    %v525 = vmul.f32 %v523, %v308
    %v526 = vmul.f32 %v514, %v514
    %v527 = vmul.f32 %v515, %v515
    %v528 = vsub.f32 %v524, %v526
    %v529 = vsub.f32 %v525, %v527
    %v530 = vmax.f32 %v528, 0.0
    %v531 = vmax.f32 %v529, 0.0
    %v532 = vadd.f32 %v530, 1e-12
    %v533 = vadd.f32 %v531, 1e-12
    %v534 = vrsqrt.pop %v532
    %v535 = vrsqrt.pop %v533
    %v536 = vsub.f32 %v506, %v514
    %v537 = vsub.f32 %v507, %v515
    %v538 = vmul.f32 %v536, %v534
    %v539 = vmul.f32 %v537, %v535
    %v541 = vlaneseq
    %v542 = vshrl.u32 %v541, 7
    %v543 = vsub.s32 0, %v542
    %v544 = vrot.slane %v436, %v543
    %v546 = vmul.f32 %v538, %v544
    %v547 = vmul.f32 %v539, %v544
    %v549 = vlaneseq
    %v550 = vshrl.u32 %v549, 7
    %v551 = vsub.s32 0, %v550
    %v552 = vrot.slane %v437, %v551
    %v554 = vadd.f32 %v546, %v552
    %v555 = vadd.f32 %v547, %v552
    %v556 = vpack.c.bf16 %v555, %v554
    %v558 = vlaneseq
    %v559 = vshrl.u32 %v558, 7
    %v560 = vsub.s32 0, %v559
    %v561 = vrot.slane %v446, %v560
    %v571 = vunpack.c.l.b16 %v438
    %v572 = vunpack.c.l.b16 %v439
    %v573 = vunpack.c.l.b16 %v440
    %v574 = vunpack.c.l.b16 %v441
    %v575 = vunpack.c.l.b16 %v442
    %v576 = vunpack.c.l.b16 %v443
    %v577 = vunpack.c.l.b16 %v444
    %v578 = vunpack.c.l.b16 %v445
    %v579 = vpack.c.b16 %v572, %v571
    %v580 = vpack.c.b16 %v574, %v573
    %v581 = vpack.c.b16 %v576, %v575
    %v582 = vpack.c.b16 %v578, %v577
    %v588 = vsel %vm301, %v556, 0
    %590 = vmatprep.subr.bf16.mxu0 0
    %591 = vmatpush1.bf16.msra.mxu0 %v579
    %592 = vmatprep.subr.bf16.mxu0 0
    %593 = vmatpush1.bf16.msra.mxu0 %v580
    %594 = vmatprep.subr.bf16.mxu0 0
    %595 = vmatpush1.bf16.msra.mxu0 %v581
    %596 = vmatprep.subr.bf16.mxu0 0
    %597 = vmatpush1.bf16.msra.mxu0 %v582
    %598 = vmatprep.subr.bf16.mxu0 0
    %599 = vmatpush1.bf16.msra.mxu0 0
    %600 = vmatprep.subr.bf16.mxu0 0
    %601 = vmatpush1.bf16.msra.mxu0 0
    %602 = vmatprep.subr.bf16.mxu0 0
    %603 = vmatpush1.bf16.msra.mxu0 0
    %604 = vmatprep.subr.bf16.mxu0 0
    %605 = vmatpush1.bf16.msra.mxu0 0
    %606 = vmatprep.subr.bf16.mxu0 0
    %607 = vmatpush1.bf16.msra.mxu0 0
    %608 = vmatprep.subr.bf16.mxu0 0
    %609 = vmatpush1.bf16.msra.mxu0 0
    %610 = vmatprep.subr.bf16.mxu0 0
    %611 = vmatpush1.bf16.msra.mxu0 0
    %612 = vmatprep.subr.bf16.mxu0 0
    %613 = vmatpush1.bf16.msra.mxu0 0
    %614 = vmatprep.subr.bf16.mxu0 0
    %615 = vmatpush1.bf16.msra.mxu0 0
    %616 = vmatprep.subr.bf16.mxu0 0
    %617 = vmatpush1.bf16.msra.mxu0 0
    %618 = vmatprep.subr.bf16.mxu0 0
    %619 = vmatpush1.bf16.msra.mxu0 0
    %620 = vmatprep.subr.bf16.mxu0 0
    %621 = vmatpush1.bf16.msra.mxu0 0
    %622 = vmatprep.mubr.bf16.mxu0 0
    %623 = vmatmul.mubr.bf16.gmra.mrb[0].mxu0 %v588
    %v624 = vpop.f32.mrb[0].mxu0
    %v625 = vadd.f32 %v561, %v624
    %v626 = vpop.f32.mrb[0].mxu0
    %v627 = vpop.f32.mrb[0].mxu0
    %v628 = vadd.f32 %v561, %v627
    %v629 = vpop.f32.mrb[0].mxu0
    %630 = vdwg.mxu0
    %v631 = vsub.f32 %v625, %v213
    %v632 = vsub.f32 %v628, %v214
    %633 = vst.msk [vmem:[#allocation25] sm:$0xff] %vm428, %v631
    %634 = vst.msk [vmem:[#allocation25 + $0x8] sm:$0xff] %vm428, %v632
    // Predicated region
    $region106: #{tpu_custom_call.1} parent=1 // pred_check
      _
    $region107: #{tpu_custom_call.1} parent=1 // pred_check_branch
      %636 = sbr.rel (0) target = $region109
    $region108: #{tpu_custom_call.1} parent=1 // pred_region
      %s638 = ssub.s32 256, 256
      %639 = vsyncadd [#allocation6], %s638
      %s640 = sshll.u32 [#allocation24], 4
      %s641 = int_to_ptr.vmem [resolvable:$true] %s640
      %646 = dma.vmem_to_hbm [thread:$0]  %s641, 256, %s14, [#allocation6], 128, 128, 8
    $region109: #{tpu_custom_call.1} parent=1 // pred_fallthru
      _
    // Predicated region
    $region110: #{tpu_custom_call.1} parent=1 // pred_check
      _
    $region111: #{tpu_custom_call.1} parent=1 // pred_check_branch
      %648 = sbr.rel (0) target = $region113
    $region112: #{tpu_custom_call.1} parent=1 // pred_region
      %s650 = ssub.s32 256, 256
      %651 = vsyncadd [#allocation26], %s650
      %s652 = sshll.u32 [#allocation25], 4
      %s653 = int_to_ptr.vmem [resolvable:$true] %s652
      %658 = dma.vmem_to_hbm [thread:$0]  %s653, 256, %s15, [#allocation26], 128, 128, 8
    $region113: #{tpu_custom_call.1} parent=1 // pred_fallthru
      _
    // Predicated region
    $region114: #{tpu_custom_call.1} parent=1 // pred_check
      _
    $region115: #{tpu_custom_call.1} parent=1 // pred_check_branch
      %660 = sbr.rel (0) target = $region117
    $region116: #{tpu_custom_call.1} parent=1 // pred_region
      %661 = dma.done [#allocation6], 256
    $region117: #{tpu_custom_call.1} parent=1 // pred_fallthru
      _
    // Predicated region
    $region118: #{tpu_custom_call.1} parent=1 // pred_check
      _
    $region119: #{tpu_custom_call.1} parent=1 // pred_check_branch
      %663 = sbr.rel (0) target = $region121
    $region120: #{tpu_custom_call.1} parent=1 // pred_region
      %664 = dma.done [#allocation26], 256
    $region121: #{tpu_custom_call.1} parent=1 // pred_fallthru
      _
    %665 = vsyncpa [#allocation5], 1
    %666 = vsyncpa [#allocation8], 1
    %667 = vsyncpa [#allocation11], 1
    %668 = vsyncpa [#allocation14], 1
    %669 = vsyncpa [#allocation17], 1
    %670 = vsyncpa [#allocation20], 1
    %671 = vsyncpa [#allocation23], 1
    %672 = vsyncpa [#allocation6], 1
    %673 = vsyncpa [#allocation26], 1

</llo_original>
